<compile_context>
chip_gen: v7x
topology: tpu7x:2x2x1
jax: 0.10.0
libtpu: 0.0.40
codegen_flags: <defaults>
</compile_context>

<pallas_src>
import functools

import jax
import jax.numpy as jnp
from jax import lax
from jax.experimental import pallas as pl
from jax.experimental.pallas import tpu as pltpu


def _standardize_kernel(w_ref, o_ref, *, eps: float, n: int, needs_mask: bool):
    # w_ref / o_ref: (TO, F_pad) tiles resident in VMEM.
    w = w_ref[...].astype(jnp.float32)

    inv_n = jnp.float32(1.0 / n)
    # torch.std default is unbiased (divide by N-1); n == 1 yields nan just
    # like torch does.
    inv_nm1 = jnp.float32(1.0 / (n - 1)) if n > 1 else jnp.float32(jnp.nan)

    if needs_mask:
        lane = lax.broadcasted_iota(jnp.int32, w.shape, 1)
        mask = lane < n
        w_for_sum = jnp.where(mask, w, 0.0)
    else:
        w_for_sum = w

    mean = jnp.sum(w_for_sum, axis=1, keepdims=True) * inv_n
    centered = w - mean

    if needs_mask:
        c_masked = jnp.where(mask, centered, 0.0)
    else:
        c_masked = centered

    var = jnp.sum(c_masked * c_masked, axis=1, keepdims=True) * inv_nm1
    # NOTE: eps is added AFTER the sqrt to match torch semantics exactly
    # (do not fold into rsqrt(var + eps)).
    std = jnp.sqrt(var) + jnp.float32(eps)
    inv_std = pl.reciprocal(std, approx=False)  # per-row (TO, 1) column

    o_ref[...] = (centered * inv_std).astype(o_ref.dtype)


def standardization(weight: jax.Array, eps: float = 1e-5) -> jax.Array:
    """Pallas equivalent of Standardization.forward(weight)."""
    orig_shape = weight.shape
    o = orig_shape[0]
    f = 1
    for d in orig_shape[1:]:
        f *= d
    w2d = weight.reshape(o, f)

    # Pad F to a lane multiple (128) and O to a sublane multiple (8).
    f_pad = pl.cdiv(f, 128) * 128
    o_pad8 = pl.cdiv(o, 8) * 8

    # ~2 MiB f32 per input block; in + out, double-buffered => ~8 MiB of VMEM,
    # comfortably under every generation's default scoped limit.
    target_bytes = 2 * 1024 * 1024
    rows = max(8, (target_bytes // (4 * f_pad)) // 8 * 8)
    to = min(rows, o_pad8)
    grid_o = pl.cdiv(o_pad8, to)
    o_pad = grid_o * to

    if (o_pad, f_pad) != (o, f):
        w2d = jnp.pad(w2d, ((0, o_pad - o), (0, f_pad - f)))

    kernel = functools.partial(
        _standardize_kernel, eps=eps, n=f, needs_mask=(f_pad != f)
    )

    # Make sure the scoped VMEM limit covers the (rare) very-wide-F case where
    # the minimum 8-row block exceeds the default limit.
    block_bytes = 4 * to * f_pad
    vmem_limit = min(128 * 1024 * 1024, max(32 * 1024 * 1024, 5 * block_bytes))

    out2d = pl.pallas_call(
        kernel,
        out_shape=jax.ShapeDtypeStruct((o_pad, f_pad), weight.dtype),
        grid_spec=pltpu.PrefetchScalarGridSpec(
            num_scalar_prefetch=0,
            grid=(grid_o,),
            in_specs=[pl.BlockSpec((to, f_pad), lambda i: (i, 0))],
            out_specs=pl.BlockSpec((to, f_pad), lambda i: (i, 0)),
        ),
        compiler_params=pltpu.CompilerParams(
            dimension_semantics=("parallel",),
            vmem_limit_bytes=vmem_limit,
        ),
    )(w2d)

    if (o_pad, f_pad) != (o, f):
        out2d = out2d[:o, :f]
    return out2d.reshape(orig_shape)


def _reference(weight: jax.Array, eps: float = 1e-5) -> jax.Array:
    dims = tuple(range(1, weight.ndim))
    w = weight.astype(jnp.float32)
    mean = jnp.mean(w, axis=dims, keepdims=True)
    n = 1
    for d in weight.shape[1:]:
        n *= d
    var = jnp.sum((w - mean) ** 2, axis=dims, keepdims=True) / (n - 1)
    std = jnp.sqrt(var) + eps
    return ((w - mean) / std).astype(weight.dtype)


if __name__ == "__main__":
    key = jax.random.PRNGKey(0)

    # Conv-weight-like tensor (O, C, H, W), PyTorch NCHW-style weight layout.
    weight = jax.random.normal(key, (4, 4, 16, 16), dtype=jnp.float32)
    out = jax.block_until_ready(standardization(weight, eps=1e-5))
    ref = _reference(weight, eps=1e-5)
    assert out.shape == weight.shape
    assert jnp.allclose(out, ref, atol=1e-5, rtol=1e-5)

    # Non-lane-aligned case (F = 3*3*3 = 27) exercises the padding/mask path.
    k2 = jax.random.PRNGKey(1)
    weight2 = jax.random.normal(k2, (6, 3, 3, 3), dtype=jnp.float32)
    out2 = jax.block_until_ready(standardization(weight2, eps=1e-5))
    ref2 = _reference(weight2, eps=1e-5)
    assert out2.shape == weight2.shape
    assert jnp.allclose(out2, ref2, atol=1e-5, rtol=1e-5)

    print("KERNEL_OK")
</pallas_src>

<mosaic_0001>
module attributes {stable_mosaic.version = 11 : i64} {
  func.func @_standardize_kernel(%arg0: i32, %arg1: memref<8x1024xf32, #tpu.memory_space<vmem>>, %arg2: memref<8x1024xf32, #tpu.memory_space<vmem>>) attributes {dimension_semantics = [#tpu.dimension_semantics<parallel>], iteration_bounds = array<i64: 1>, scalar_prefetch = 0 : i64, scratch_operands = 0 : i64, tpu.core_type = #tpu.core_type<tc>, window_params = [{transform_indices = @transform_0, window_bounds = array<i64: 8, 1024>}, {transform_indices = @transform_1, window_bounds = array<i64: 8, 1024>}]} {
    %c0 = arith.constant 0 : index
    %c0_0 = arith.constant 0 : index
    %0 = vector.load %arg1[%c0, %c0_0] : memref<8x1024xf32, #tpu.memory_space<vmem>>, vector<8x1024xf32>
    %cst = arith.constant dense<0.000000e+00> : vector<8xf32>
    %1 = vector.multi_reduction <add>, %0, %cst [1] : vector<8x1024xf32> to vector<8xf32>
    %2 = vector.shape_cast %1 : vector<8xf32> to vector<8x1xf32>
    %cst_1 = arith.constant 9.765625E-4 : f32
    %3 = vector.broadcast %cst_1 : f32 to vector<8x1xf32>
    %4 = arith.mulf %2, %3 : vector<8x1xf32>
    %5 = vector.broadcast %4 : vector<8x1xf32> to vector<8x1024xf32>
    %6 = arith.subf %0, %5 : vector<8x1024xf32>
    %7 = arith.mulf %6, %6 : vector<8x1024xf32>
    %cst_2 = arith.constant dense<0.000000e+00> : vector<8xf32>
    %8 = vector.multi_reduction <add>, %7, %cst_2 [1] : vector<8x1024xf32> to vector<8xf32>
    %9 = vector.shape_cast %8 : vector<8xf32> to vector<8x1xf32>
    %cst_3 = arith.constant 9.77517105E-4 : f32
    %10 = vector.broadcast %cst_3 : f32 to vector<8x1xf32>
    %11 = arith.mulf %9, %10 : vector<8x1xf32>
    %12 = math.sqrt %11 : vector<8x1xf32>
    %cst_4 = arith.constant 9.99999974E-6 : f32
    %13 = vector.broadcast %cst_4 : f32 to vector<8x1xf32>
    %14 = arith.addf %12, %13 : vector<8x1xf32>
    %15 = tpu.reciprocal %14 : vector<8x1xf32> -> vector<8x1xf32>
    %16 = vector.broadcast %15 : vector<8x1xf32> to vector<8x1024xf32>
    %17 = arith.mulf %6, %16 : vector<8x1024xf32>
    %c0_5 = arith.constant 0 : index
    %c0_6 = arith.constant 0 : index
    %18 = vector.load %arg2[%c0_5, %c0_6] : memref<8x1024xf32, #tpu.memory_space<vmem>>, vector<8x1024xf32>
    tpu.vector_store %arg2[%c0_5, %c0_6], %17 {strides = array<i32>} : memref<8x1024xf32, #tpu.memory_space<vmem>>, vector<8x1024xf32>,
    return
  }
  func.func @transform_0(%arg0: i32) -> (i32, i32) {
    %c0_i32 = arith.constant 0 : i32
    %c0_i32_0 = arith.constant 0 : i32
    return %arg0, %c0_i32 : i32, i32
  }
  func.func @transform_1(%arg0: i32) -> (i32, i32) {
    %c0_i32 = arith.constant 0 : i32
    %c0_i32_0 = arith.constant 0 : i32
    return %arg0, %c0_i32 : i32, i32
  }
}

</mosaic_0001>

<llo_original>
// kernel: tpu_custom_call.1
$region0: #{tpu_custom_call.1}
  #allocation0 [shape = 'u32[]', space=smem, size = 0x4, offset = 0x4, fixed_abs, tag = 'smem constant byte address 0x4 - core index']
  #allocation1 [shape = 'u32[144,128]{1,0:T(1,128)}', space=vmem, size = 0x12000, scoped, tag = 'internal scratch']
  %s0 = inlined_call_operand.hbm [shape: f32[8,1024], index: 0, kind: input, shape index: {}]
  %s1 = inlined_call_operand.hbm [shape: f32[8,1024], index: 1, kind: output, shape index: {}]
  %s2 = sld [smem:[#allocation0]]
  $region18: #{tpu_custom_call.1} parent=0
    _
  %s4 = ssub.s32 1, %s2
  %s5 = scalar_select 0, %s4, %s2
  $region1: #{tpu_custom_call.1} parent=0
    #allocation2 [shape = 'u8[32768]{0}', space=vmem, size = 0x8000, scoped, tag = 'input window, operand 0, single buffered']
    #allocation3 [shape = 's32[1]{0}', space=sflag, size = 0x4, scoped, tag = 'scoped memory for tpu_custom_call.1']
    #allocation4 [shape = 's32[1]{0}', space=sflag, size = 0x4, scoped, tag = 'scoped memory for tpu_custom_call.1']
    #allocation5 [shape = 'u8[32768]{0}', space=vmem, size = 0x8000, scoped, tag = 'output window, operand 0, single buffered']
    %6 = vsyncpa [#allocation3], 0
    %7 = vsyncpa [#allocation4], 0
    // Predicated region
    $region2: #{tpu_custom_call.1} parent=1 // pred_check
      _
    $region3: #{tpu_custom_call.1} parent=1 // pred_check_branch
      %9 = sbr.rel (0) target = $region5
    $region4: #{tpu_custom_call.1} parent=1 // pred_region
      %s11 = ssub.s32 1024, 1024
      %12 = vsyncadd [#allocation3], %s11
      %s14 = sshll.u32 [#allocation2], 4
      %s15 = int_to_ptr.vmem [resolvable:$true] %s14
      %17 = dma.hbm_to_vmem [thread:$0]  %s0, 1024, %s15, [#allocation3]
    $region5: #{tpu_custom_call.1} parent=1 // pred_fallthru
      _
    // Predicated region
    $region6: #{tpu_custom_call.1} parent=1 // pred_check
      _
    $region7: #{tpu_custom_call.1} parent=1 // pred_check_branch
      %19 = sbr.rel (0) target = $region9
    $region8: #{tpu_custom_call.1} parent=1 // pred_region
      %20 = dma.done [#allocation3], 1024
    $region9: #{tpu_custom_call.1} parent=1 // pred_fallthru
      _
    %v21 = vld [vmem:[#allocation2] sm:$0xff]
    %v22 = vld [vmem:[#allocation2 + $0x8] sm:$0xff]
    %v23 = vld [vmem:[#allocation2 + $0x10] sm:$0xff]
    %v24 = vld [vmem:[#allocation2 + $0x18] sm:$0xff]
    %v25 = vld [vmem:[#allocation2 + $0x20] sm:$0xff]
    %v26 = vld [vmem:[#allocation2 + $0x28] sm:$0xff]
    %v27 = vld [vmem:[#allocation2 + $0x30] sm:$0xff]
    %v28 = vld [vmem:[#allocation2 + $0x38] sm:$0xff]
    %v29 = vadd.f32 %v21, %v22
    %v30 = vadd.f32 %v29, %v23
    %v31 = vadd.f32 %v30, %v24
    %v32 = vadd.f32 %v31, %v25
    %v33 = vadd.f32 %v32, %v26
    %v34 = vadd.f32 %v33, %v27
    %v35 = vadd.f32 %v34, %v28
    %36 = vadd.xlane.f32.xlu0 %v35
    %v37 = vpop.xlane.xlu0 %36
    %v38 = vmul.f32 %v37, 0.0009765625
    %v39 = vsub.f32 %v21, %v38
    %v40 = vsub.f32 %v22, %v38
    %v41 = vsub.f32 %v23, %v38
    %v42 = vsub.f32 %v24, %v38
    %v43 = vsub.f32 %v25, %v38
    %v44 = vsub.f32 %v26, %v38
    %v45 = vsub.f32 %v27, %v38
    %v46 = vsub.f32 %v28, %v38
    %v47 = vmul.f32 %v39, %v39
    %v48 = vmul.f32 %v40, %v40
    %v49 = vmul.f32 %v41, %v41
    %v50 = vmul.f32 %v42, %v42
    %v51 = vmul.f32 %v43, %v43
    %v52 = vmul.f32 %v44, %v44
    %v53 = vmul.f32 %v45, %v45
    %v54 = vmul.f32 %v46, %v46
    %v55 = vadd.f32 %v47, %v48
    %v56 = vadd.f32 %v55, %v49
    %v57 = vadd.f32 %v56, %v50
    %v58 = vadd.f32 %v57, %v51
    %v59 = vadd.f32 %v58, %v52
    %v60 = vadd.f32 %v59, %v53
    %v61 = vadd.f32 %v60, %v54
    %62 = vadd.xlane.f32.xlu0 %v61
    %v63 = vpop.xlane.xlu0 %62
    %v64 = vmul.f32 %v63, 0.0009775171
    %v65 = vrsqrt.pop %v64
    %v66 = vmul.f32 %v64, %v65
    %vm67 = vcmp.eq.f32.partialorder %v64, inf
    %v68 = vsel %vm67, %v64, %v66
    %vm69 = vcmp.eq.f32.partialorder %v64, 0.0
    %v70 = vand.u32 %v64, 2147483648
    %v71 = vsel %vm69, %v70, %v68
    %v72 = vadd.f32 %v71, 1e-05
    %v73 = vrcp.pop %v72
    %v74 = vmul.f32 %v39, %v73
    %v75 = vmul.f32 %v40, %v73
    %v76 = vmul.f32 %v41, %v73
    %v77 = vmul.f32 %v42, %v73
    %v78 = vmul.f32 %v43, %v73
    %v79 = vmul.f32 %v44, %v73
    %v80 = vmul.f32 %v45, %v73
    %v81 = vmul.f32 %v46, %v73
    %82 = vst [vmem:[#allocation5] sm:$0xff] %v74
    %83 = vst [vmem:[#allocation5 + $0x8] sm:$0xff] %v75
    %84 = vst [vmem:[#allocation5 + $0x10] sm:$0xff] %v76
    %85 = vst [vmem:[#allocation5 + $0x18] sm:$0xff] %v77
    %86 = vst [vmem:[#allocation5 + $0x20] sm:$0xff] %v78
    %87 = vst [vmem:[#allocation5 + $0x28] sm:$0xff] %v79
    %88 = vst [vmem:[#allocation5 + $0x30] sm:$0xff] %v80
    %89 = vst [vmem:[#allocation5 + $0x38] sm:$0xff] %v81
    // Predicated region
    $region10: #{tpu_custom_call.1} parent=1 // pred_check
      _
    $region11: #{tpu_custom_call.1} parent=1 // pred_check_branch
      %91 = sbr.rel (0) target = $region13
    $region12: #{tpu_custom_call.1} parent=1 // pred_region
      %s93 = ssub.s32 1024, 1024
      %94 = vsyncadd [#allocation4], %s93
      %s96 = sshll.u32 [#allocation5], 4
      %s97 = int_to_ptr.vmem [resolvable:$true] %s96
      %99 = dma.vmem_to_hbm [thread:$0]  %s97, 1024, %s1, [#allocation4]
    $region13: #{tpu_custom_call.1} parent=1 // pred_fallthru
      _
    // Predicated region
    $region14: #{tpu_custom_call.1} parent=1 // pred_check
      _
    $region15: #{tpu_custom_call.1} parent=1 // pred_check_branch
      %101 = sbr.rel (0) target = $region17
    $region16: #{tpu_custom_call.1} parent=1 // pred_region
      %102 = dma.done [#allocation4], 1024
    $region17: #{tpu_custom_call.1} parent=1 // pred_fallthru
      _
    %103 = vsyncpa [#allocation3], 1
    %104 = vsyncpa [#allocation4], 1

</llo_original>
